<compile_context>
chip_gen: v7x
topology: tpu7x:2x2x1
jax: 0.10.0
libtpu: 0.0.40
codegen_flags: <defaults>
</compile_context>

<pallas_src>
import functools

import jax
import jax.numpy as jnp
from jax import lax
from jax.experimental import pallas as pl
from jax.experimental.pallas import tpu as pltpu


def _round_up(x, m):
    return ((x + m - 1) // m) * m


def _vmem_capacity_bytes():
    """Physical VMEM capacity of the current TPU generation (fallback: 64 MiB)."""
    try:
        cap = getattr(pltpu.get_tpu_info(), "vmem_capacity_bytes", None)
        if cap:
            return int(cap)
    except Exception:
        pass
    return 64 << 20  # conservative (v7x-sized) default


def _log_softmax_rows(logits, num_valid):
    """Stable log-softmax over the last axis of an f32 block.

    Padded class columns (>= num_valid) are masked to -inf so they do not
    contribute to the max / logsumexp; the mask is skipped at trace time when
    there is no class padding.
    """
    if num_valid < logits.shape[-1]:
        col = lax.broadcasted_iota(jnp.int32, logits.shape, logits.ndim - 1)
        logits = jnp.where(col < num_valid, logits, -jnp.inf)
    m = jnp.max(logits, axis=-1, keepdims=True)
    shifted = logits - m
    lse = jnp.log(jnp.sum(jnp.exp(shifted), axis=-1, keepdims=True))
    return shifted - lse


# ---------------------------------------------------------------------------
# Kernels
# ---------------------------------------------------------------------------
def _fused_single_kernel(x_ref, w_ref, o_ref, *, num_valid_classes):
    # x: [tn, f_pad], w: [f_pad, c_pad] (resident, DMAed once), o: [tn, c_pad].
    logits = jnp.dot(x_ref[...], w_ref[...], preferred_element_type=jnp.float32)
    o_ref[...] = _log_softmax_rows(logits, num_valid_classes).astype(o_ref.dtype)


def _fused_ksplit_kernel(x_ref, w_ref, o_ref, acc_ref, *, num_valid_classes):
    # x: [tn, tf], w: [tf, c_pad], acc/o: [tn, c_pad]; feature axis is the
    # last ("arbitrary") reduction axis.
    k = pl.program_id(1)

    @pl.when(k == 0)
    def _():
        acc_ref[...] = jnp.zeros_like(acc_ref)

    acc_ref[...] += jnp.dot(x_ref[...], w_ref[...],
                            preferred_element_type=jnp.float32)

    @pl.when(k == pl.num_programs(1) - 1)
    def _():
        # Epilogue kept in-place in the accumulator to minimise live [tn, c_pad]
        # f32 temporaries (vreg / spill pressure for large c_pad).
        if num_valid_classes < acc_ref.shape[-1]:
            col = lax.broadcasted_iota(jnp.int32, acc_ref.shape, 1)
            acc_ref[...] = jnp.where(col < num_valid_classes,
                                     acc_ref[...], -jnp.inf)
        m = jnp.max(acc_ref[...], axis=-1, keepdims=True)
        acc_ref[...] = acc_ref[...] - m
        lse = jnp.log(jnp.sum(jnp.exp(acc_ref[...]), axis=-1, keepdims=True))
        o_ref[...] = (acc_ref[...] - lse).astype(o_ref.dtype)


def _matmul_kernel(x_ref, w_ref, o_ref, acc_ref):
    # Class-tiled fallback matmul: x [tn, tf] @ w [tf, tc] -> o [tn, tc] (f32).
    @pl.when(pl.program_id(2) == 0)
    def _():
        acc_ref[...] = jnp.zeros_like(acc_ref)

    acc_ref[...] += jnp.dot(x_ref[...], w_ref[...],
                            preferred_element_type=jnp.float32)

    @pl.when(pl.program_id(2) == pl.num_programs(2) - 1)
    def _():
        o_ref[...] = acc_ref[...].astype(o_ref.dtype)


def _log_softmax_kernel(l_ref, o_ref, *, num_valid_classes):
    o_ref[...] = _log_softmax_rows(l_ref[...].astype(jnp.float32),
                                   num_valid_classes).astype(o_ref.dtype)


# ---------------------------------------------------------------------------
# Wrapper
# ---------------------------------------------------------------------------
def classification_forward(embeds, weight, *, force_class_tiling=False,
                           _vmem_budget_override=None):
    """embeds: [N, in_feats], weight: [num_classes, in_feats] -> [N, num_classes] log-probs."""
    n, f = embeds.shape
    c, f_w = weight.shape
    assert f == f_w, "feature dims must match"

    in_bytes = jnp.dtype(embeds.dtype).itemsize
    out_dtype = jnp.float32

    # Lane-dense padded dims.
    c_pad = _round_up(c, 128)
    f_pad = _round_up(f, 128)

    # Dtype-aware sublane rounding for the N tile (8 f32 / 16 bf16 / 32 8-bit),
    # and >=2 N tiles whenever possible so both v7x TensorCores get work.
    sub = {1: 32, 2: 16}.get(in_bytes, 8)
    if n > 256:
        tn = 256
    else:
        tn = _round_up(n, sub)
        if n > sub:
            tn = _round_up((n + 1) // 2, sub)
    n_pad = _round_up(n, tn)
    n_tiles = n_pad // tn

    # Generation-aware VMEM budget (v5e/v6e: 128 MiB physical, v7x: 64 MiB).
    cap = _vmem_capacity_bytes()
    budget = int(cap * 0.65) if _vmem_budget_override is None \
        else int(_vmem_budget_override)

    def _vmem_limit(working):
        return int(min(max(working + (16 << 20), 32 << 20), int(cap * 0.9)))

    # Pad only when needed (avoid an extra HBM copy for aligned shapes) and
    # transpose the weight once to [f_pad, c_pad] so the kernel matmul needs no
    # per-step transpose of the weight slab.
    # TODO(synk): store the classifier weight pre-transposed in the model so the
    # one-off transpose is not re-materialised per call when running eagerly.
    x_p = embeds if (n_pad == n and f_pad == f) else \
        jnp.pad(embeds, ((0, n_pad - n), (0, f_pad - f)))
    w_p = weight if (c_pad == c and f_pad == f) else \
        jnp.pad(weight, ((0, c_pad - c), (0, f_pad - f)))
    w_t = w_p.T  # [f_pad, c_pad]

    # ----------------- fused path: full class axis per N tile -----------------
    fused_tf = None
    fused_ws = 0
    if not force_class_tiling:
        cands = [f_pad] + [t for t in (2048, 1024, 512, 256, 128)
                           if t < f_pad and f_pad % t == 0]
        for tf in cands:
            acc_bytes = 0 if tf == f_pad else tn * c_pad * 4
            ws = (2 * tn * tf * in_bytes          # embeds tile (double-buffered)
                  + 2 * tf * c_pad * in_bytes     # weight slab (double-buffered)
                  + 2 * tn * c_pad * 4            # output block (double-buffered)
                  + acc_bytes)                    # f32 logits accumulator
            if ws <= budget:
                fused_tf, fused_ws = tf, ws
                break

    if fused_tf is not None:
        if fused_tf == f_pad:
            # Whole weight resident in VMEM; reduction axis collapsed, weight is
            # DMAed from HBM exactly once (constant index map), no accumulator.
            kernel = functools.partial(_fused_single_kernel, num_valid_classes=c)
            grid_spec = pltpu.PrefetchScalarGridSpec(
                num_scalar_prefetch=0,
                grid=(n_tiles,),
                in_specs=[
                    pl.BlockSpec((tn, f_pad), lambda i: (i, 0)),
                    pl.BlockSpec((f_pad, c_pad), lambda i: (0, 0)),
                ],
                out_specs=pl.BlockSpec((tn, c_pad), lambda i: (i, 0)),
            )
            dim_sem = ("parallel",)
            w_stream_bytes = c_pad * f_pad * in_bytes
        else:
            kernel = functools.partial(_fused_ksplit_kernel, num_valid_classes=c)
            k_tiles = f_pad // fused_tf
            grid_spec = pltpu.PrefetchScalarGridSpec(
                num_scalar_prefetch=0,
                grid=(n_tiles, k_tiles),
                in_specs=[
                    pl.BlockSpec((tn, fused_tf), lambda i, k: (i, k)),
                    pl.BlockSpec((fused_tf, c_pad), lambda i, k: (k, 0)),
                ],
                out_specs=pl.BlockSpec((tn, c_pad), lambda i, k: (i, 0)),
                scratch_shapes=[pltpu.VMEM((tn, c_pad), jnp.float32)],
            )
            dim_sem = ("parallel", "arbitrary")
            # Weight is re-streamed once per N tile in this regime.
            w_stream_bytes = n_tiles * c_pad * f_pad * in_bytes

        out_pad = pl.pallas_call(
            kernel,
            out_shape=jax.ShapeDtypeStruct((n_pad, c_pad), out_dtype),
            grid_spec=grid_spec,
            compiler_params=pltpu.CompilerParams(
                dimension_semantics=dim_sem,
                vmem_limit_bytes=_vmem_limit(fused_ws),
            ),
            cost_estimate=pl.CostEstimate(
                flops=2 * n_pad * c_pad * f_pad,
                transcendentals=n_pad * c_pad + n_pad,
                bytes_accessed=(n_pad * f_pad * in_bytes + w_stream_bytes
                                + n_pad * c_pad * 4),
            ),
        )(x_p, w_t)
        return out_pad[:n, :c]

    # ---------------- class-tiled fallback (huge num_classes) -----------------
    tf_fb = max(t for t in (512, 256, 128) if f_pad % t == 0)
    tc = 128
    for cand in (2048, 1024, 512, 256, 128):
        if c_pad % cand != 0:
            continue
        ws = (2 * tn * tf_fb * in_bytes + 2 * tf_fb * cand * in_bytes
              + 2 * tn * cand * 4 + tn * cand * 4)
        if ws <= budget:
            tc = cand
            break
    mm_ws = (2 * tn * tf_fb * in_bytes + 2 * tf_fb * tc * in_bytes
             + 2 * tn * tc * 4 + tn * tc * 4)
    c_tiles = c_pad // tc
    k_tiles = f_pad // tf_fb

    logits = pl.pallas_call(
        _matmul_kernel,
        out_shape=jax.ShapeDtypeStruct((n_pad, c_pad), jnp.float32),
        grid_spec=pltpu.PrefetchScalarGridSpec(
            num_scalar_prefetch=0,
            grid=(n_tiles, c_tiles, k_tiles),
            in_specs=[
                pl.BlockSpec((tn, tf_fb), lambda i, j, k: (i, k)),
                pl.BlockSpec((tf_fb, tc), lambda i, j, k: (k, j)),
            ],
            out_specs=pl.BlockSpec((tn, tc), lambda i, j, k: (i, j)),
            scratch_shapes=[pltpu.VMEM((tn, tc), jnp.float32)],
        ),
        compiler_params=pltpu.CompilerParams(
            dimension_semantics=("parallel", "parallel", "arbitrary"),
            vmem_limit_bytes=_vmem_limit(mm_ws),
        ),
        cost_estimate=pl.CostEstimate(
            flops=2 * n_pad * c_pad * f_pad,
            transcendentals=0,
            bytes_accessed=(c_tiles * n_pad * f_pad * in_bytes
                            + n_tiles * c_pad * f_pad * in_bytes
                            + n_pad * c_pad * 4),
        ),
    )(x_p, w_t)

    # Row-wise log-softmax over the full (padded) class axis.
    tn2 = 8
    for cand in (256, 128, 64, 32, 16, 8):
        if n_pad % cand == 0 and 4 * cand * c_pad * 4 <= budget:
            tn2 = cand
            break
    # TODO(synk): two-pass / online logsumexp across class tiles for heads so
    # large that even an (8, c_pad) f32 row block does not fit in VMEM.
    ls_ws = 4 * tn2 * c_pad * 4

    out_pad = pl.pallas_call(
        functools.partial(_log_softmax_kernel, num_valid_classes=c),
        out_shape=jax.ShapeDtypeStruct((n_pad, c_pad), out_dtype),
        grid_spec=pltpu.PrefetchScalarGridSpec(
            num_scalar_prefetch=0,
            grid=(n_pad // tn2,),
            in_specs=[pl.BlockSpec((tn2, c_pad), lambda i: (i, 0))],
            out_specs=pl.BlockSpec((tn2, c_pad), lambda i: (i, 0)),
        ),
        compiler_params=pltpu.CompilerParams(
            dimension_semantics=("parallel",),
            vmem_limit_bytes=_vmem_limit(ls_ws),
        ),
        cost_estimate=pl.CostEstimate(
            flops=4 * n_pad * c_pad,
            transcendentals=n_pad * c_pad + n_pad,
            bytes_accessed=2 * n_pad * c_pad * 4,
        ),
    )(logits)
    return out_pad[:n, :c]


def kaiming_normal(key, shape):
    # Matches torch.nn.init.kaiming_normal_ defaults for a 2-D parameter
    # (mode='fan_in', nonlinearity='leaky_relu', a=0  =>  std = sqrt(2 / fan_in)).
    fan_in = shape[1]
    std = jnp.sqrt(2.0 / fan_in)
    return jax.random.normal(key, shape, dtype=jnp.float32) * std


def _bf16_representable(x):
    # Round test inputs to bf16-representable f32 values so any bf16 MXU pass
    # (kernel or XLA reference) is exact and results differ only by f32
    # accumulation order.
    return x.astype(jnp.bfloat16).astype(jnp.float32)


if __name__ == "__main__":
    key = jax.random.PRNGKey(0)
    kw1, kx1, kw2, kx2 = jax.random.split(key, 4)

    # ---- small shapes consistent with the module's forward ----
    batch, in_feats, num_classes = 8, 32, 16
    weight = _bf16_representable(kaiming_normal(kw1, (num_classes, in_feats)))
    embeds = _bf16_representable(
        jax.random.normal(kx1, (batch, in_feats), dtype=jnp.float32))
    # torch: log_softmax((weight @ embeds.T).T, 1) == log_softmax(embeds @ weight.T, 1)
    ref = jax.nn.log_softmax(embeds @ weight.T, axis=1)

    out = jax.block_until_ready(classification_forward(embeds, weight))
    assert out.shape == (batch, num_classes)
    assert jnp.allclose(out, ref, atol=1e-4, rtol=1e-4)

    # ---- also exercise the feature-split and class-tiled fallback paths at
    # small shapes (padding, class masking, multiple N tiles) ----
    batch2, in_feats2, num_classes2 = 24, 256, 200
    weight2 = _bf16_representable(kaiming_normal(kw2, (num_classes2, in_feats2)))
    embeds2 = _bf16_representable(
        jax.random.normal(kx2, (batch2, in_feats2), dtype=jnp.float32))
    ref2 = jax.nn.log_softmax(embeds2 @ weight2.T, axis=1)

    out_ksplit = jax.block_until_ready(
        classification_forward(embeds2, weight2,
                               _vmem_budget_override=500 * 1024))
    assert out_ksplit.shape == (batch2, num_classes2)
    assert jnp.allclose(out_ksplit, ref2, atol=1e-4, rtol=1e-4)

    out_fallback = jax.block_until_ready(
        classification_forward(embeds2, weight2, force_class_tiling=True))
    assert out_fallback.shape == (batch2, num_classes2)
    assert jnp.allclose(out_fallback, ref2, atol=1e-4, rtol=1e-4)

    print("KERNEL_OK")
</pallas_src>

<mosaic_0001>
module attributes {stable_mosaic.version = 11 : i64} {
  func.func @_fused_single_kernel(%arg0: i32, %arg1: memref<8x128xf32, #tpu.memory_space<vmem>>, %arg2: memref<128x128xf32, #tpu.memory_space<vmem>>, %arg3: memref<8x128xf32, #tpu.memory_space<vmem>>) attributes {dimension_semantics = [#tpu.dimension_semantics<parallel>], iteration_bounds = array<i64: 1>, scalar_prefetch = 0 : i64, scratch_operands = 0 : i64, tpu.core_type = #tpu.core_type<tc>, window_params = [{transform_indices = @transform_0, window_bounds = array<i64: 8, 128>}, {pipeline_mode = #tpu.pipeline_mode<synchronous>, transform_indices = @transform_1, window_bounds = array<i64: 128, 128>}, {transform_indices = @transform_2, window_bounds = array<i64: 8, 128>}]} {
    %c0 = arith.constant 0 : index
    %c0_0 = arith.constant 0 : index
    %0 = vector.load %arg1[%c0, %c0_0] : memref<8x128xf32, #tpu.memory_space<vmem>>, vector<8x128xf32>
    %c0_1 = arith.constant 0 : index
    %c0_2 = arith.constant 0 : index
    %1 = vector.load %arg2[%c0_1, %c0_2] : memref<128x128xf32, #tpu.memory_space<vmem>>, vector<128x128xf32>
    %cst = arith.constant dense<0.000000e+00> : vector<8x128xf32>
    %2 = tpu.matmul %0, %1, %cst {dimension_numbers = #tpu.dot_dimension_numbers<[1], [0], [0], [1], [0, 0, 1, 1], [], []>} : vector<8x128xf32>, vector<128x128xf32>, vector<8x128xf32> -> vector<8x128xf32>
    %3 = tpu.iota {dimensions = array<i32: 1>} : vector<8x128xi32>
    %c16_i32 = arith.constant 16 : i32
    %4 = vector.broadcast %c16_i32 : i32 to vector<8x128xi32>
    %5 = arith.cmpi slt, %3, %4 : vector<8x128xi32>
    %cst_3 = arith.constant 0xFF800000 : f32
    %6 = vector.broadcast %cst_3 : f32 to vector<8x128xf32>
    %7 = arith.select %5, %2, %6 : vector<8x128xi1>, vector<8x128xf32>
    %cst_4 = arith.constant dense<0xFF800000> : vector<8xf32>
    %8 = vector.multi_reduction <maximumf>, %7, %cst_4 [1] : vector<8x128xf32> to vector<8xf32>
    %9 = vector.shape_cast %8 : vector<8xf32> to vector<8x1xf32>
    %10 = vector.broadcast %9 : vector<8x1xf32> to vector<8x128xf32>
    %11 = arith.subf %7, %10 : vector<8x128xf32>
    %12 = math.exp %11 : vector<8x128xf32>
    %cst_5 = arith.constant dense<0.000000e+00> : vector<8xf32>
    %13 = vector.multi_reduction <add>, %12, %cst_5 [1] : vector<8x128xf32> to vector<8xf32>
    %14 = vector.shape_cast %13 : vector<8xf32> to vector<8x1xf32>
    %15 = math.log %14 : vector<8x1xf32>
    %16 = vector.broadcast %15 : vector<8x1xf32> to vector<8x128xf32>
    %17 = arith.subf %11, %16 : vector<8x128xf32>
    %c0_6 = arith.constant 0 : index
    %c0_7 = arith.constant 0 : index
    %18 = vector.load %arg3[%c0_6, %c0_7] : memref<8x128xf32, #tpu.memory_space<vmem>>, vector<8x128xf32>
    tpu.vector_store %arg3[%c0_6, %c0_7], %17 {strides = array<i32>} : memref<8x128xf32, #tpu.memory_space<vmem>>, vector<8x128xf32>,
    return
  }
  func.func @transform_0(%arg0: i32) -> (i32, i32) {
    %c0_i32 = arith.constant 0 : i32
    %c0_i32_0 = arith.constant 0 : i32
    return %arg0, %c0_i32 : i32, i32
  }
  func.func @transform_1(%arg0: i32) -> (i32, i32) {
    %c0_i32 = arith.constant 0 : i32
    %c0_i32_0 = arith.constant 0 : i32
    %c0_i32_1 = arith.constant 0 : i32
    return %c0_i32, %c0_i32_0 : i32, i32
  }
  func.func @transform_2(%arg0: i32) -> (i32, i32) {
    %c0_i32 = arith.constant 0 : i32
    %c0_i32_0 = arith.constant 0 : i32
    return %arg0, %c0_i32 : i32, i32
  }
}

</mosaic_0001>

<llo_original>
// kernel: tpu_custom_call.1
$region0: #{tpu_custom_call.1}
  #allocation0 [shape = 'u32[]', space=smem, size = 0x4, offset = 0x4, fixed_abs, tag = 'smem constant byte address 0x4 - core index']
  #allocation1 [shape = 'u32[144,128]{1,0:T(1,128)}', space=vmem, size = 0x12000, scoped, tag = 'internal scratch']
  %s0 = inlined_call_operand.hbm [shape: f32[8,128], index: 0, kind: input, shape index: {}]
  %s1 = inlined_call_operand.hbm [shape: f32[128,128], index: 1, kind: input, shape index: {}]
  %s2 = inlined_call_operand.hbm [shape: f32[8,128], index: 2, kind: output, shape index: {}]
  %s3 = sld [smem:[#allocation0]]
  $region26: #{tpu_custom_call.1} parent=0
    _
  %s5 = ssub.s32 1, %s3
  %s6 = scalar_select 0, %s5, %s3
  $region1: #{tpu_custom_call.1} parent=0
    #allocation2 [shape = 'u8[4096]{0}', space=vmem, size = 0x1000, scoped, tag = 'input window, operand 0, single buffered']
    #allocation3 [shape = 's32[1]{0}', space=sflag, size = 0x4, scoped, tag = 'scoped memory for tpu_custom_call.1']
    #allocation4 [shape = 's32[1]{0}', space=sflag, size = 0x4, scoped, tag = 'scoped memory for tpu_custom_call.1']
    #allocation5 [shape = 'u8[65536]{0}', space=vmem, size = 0x10000, scoped, tag = 'input window, operand 1, single buffered']
    #allocation6 [shape = 's32[1]{0}', space=sflag, size = 0x4, scoped, tag = 'scoped memory for tpu_custom_call.1']
    #allocation7 [shape = 'u8[4096]{0}', space=vmem, size = 0x1000, scoped, tag = 'output window, operand 0, single buffered']
    %7 = vsyncpa [#allocation3], 0
    %8 = vsyncpa [#allocation6], 0
    %9 = vsyncpa [#allocation4], 0
    // Predicated region
    $region2: #{tpu_custom_call.1} parent=1 // pred_check
      _
    $region3: #{tpu_custom_call.1} parent=1 // pred_check_branch
      %11 = sbr.rel (0) target = $region5
    $region4: #{tpu_custom_call.1} parent=1 // pred_region
      %s13 = ssub.s32 128, 128
      %14 = vsyncadd [#allocation3], %s13
      %s16 = sshll.u32 [#allocation2], 4
      %s17 = int_to_ptr.vmem [resolvable:$true] %s16
      %19 = dma.hbm_to_vmem [thread:$0]  %s0, 128, %s17, [#allocation3]
    $region5: #{tpu_custom_call.1} parent=1 // pred_fallthru
      _
    // Predicated region
    $region6: #{tpu_custom_call.1} parent=1 // pred_check
      _
    $region7: #{tpu_custom_call.1} parent=1 // pred_check_branch
      %21 = sbr.rel (0) target = $region9
    $region8: #{tpu_custom_call.1} parent=1 // pred_region
      %s23 = ssub.s32 2048, 2048
      %24 = vsyncadd [#allocation6], %s23
      %s25 = sshll.u32 [#allocation5], 4
      %s26 = int_to_ptr.vmem [resolvable:$true] %s25
      %31 = dma.hbm_to_vmem [thread:$0]  %s1, 2048, %s26, [#allocation6], 128, 128, 8
    $region9: #{tpu_custom_call.1} parent=1 // pred_fallthru
      _
    // Predicated region
    $region10: #{tpu_custom_call.1} parent=1 // pred_check
      _
    $region11: #{tpu_custom_call.1} parent=1 // pred_check_branch
      %33 = sbr.rel (0) target = $region13
    $region12: #{tpu_custom_call.1} parent=1 // pred_region
      %34 = dma.done [#allocation3], 128
    $region13: #{tpu_custom_call.1} parent=1 // pred_fallthru
      _
    // Predicated region
    $region14: #{tpu_custom_call.1} parent=1 // pred_check
      _
    $region15: #{tpu_custom_call.1} parent=1 // pred_check_branch
      %36 = sbr.rel (0) target = $region17
    $region16: #{tpu_custom_call.1} parent=1 // pred_region
      %37 = dma.done [#allocation6], 2048
    $region17: #{tpu_custom_call.1} parent=1 // pred_fallthru
      _
    %v38 = vld [vmem:[#allocation2] sm:$0xff]
    %v39 = vld [vmem:[#allocation5] sm:$0xff]
    %v40 = vld [vmem:[#allocation5 + $0x8] sm:$0xff]
    %v41 = vld [vmem:[#allocation5 + $0x10] sm:$0xff]
    %v42 = vld [vmem:[#allocation5 + $0x18] sm:$0xff]
    %v43 = vld [vmem:[#allocation5 + $0x20] sm:$0xff]
    %v44 = vld [vmem:[#allocation5 + $0x28] sm:$0xff]
    %v45 = vld [vmem:[#allocation5 + $0x30] sm:$0xff]
    %v46 = vld [vmem:[#allocation5 + $0x38] sm:$0xff]
    %v47 = vld [vmem:[#allocation5 + $0x40] sm:$0xff]
    %v48 = vld [vmem:[#allocation5 + $0x48] sm:$0xff]
    %v49 = vld [vmem:[#allocation5 + $0x50] sm:$0xff]
    %v50 = vld [vmem:[#allocation5 + $0x58] sm:$0xff]
    %v51 = vld [vmem:[#allocation5 + $0x60] sm:$0xff]
    %v52 = vld [vmem:[#allocation5 + $0x68] sm:$0xff]
    %v53 = vld [vmem:[#allocation5 + $0x70] sm:$0xff]
    %v54 = vld [vmem:[#allocation5 + $0x78] sm:$0xff]
    %55 = vmatprep.subr.mxu0 0.0
    %56 = vmatpush1.msra.mxu0 %v39
    %57 = vmatprep.subr.mxu0 0.0
    %58 = vmatpush1.msra.mxu0 %v40
    %59 = vmatprep.subr.mxu0 0.0
    %60 = vmatpush1.msra.mxu0 %v41
    %61 = vmatprep.subr.mxu0 0.0
    %62 = vmatpush1.msra.mxu0 %v42
    %63 = vmatprep.subr.mxu0 0.0
    %64 = vmatpush1.msra.mxu0 %v43
    %65 = vmatprep.subr.mxu0 0.0
    %66 = vmatpush1.msra.mxu0 %v44
    %67 = vmatprep.subr.mxu0 0.0
    %68 = vmatpush1.msra.mxu0 %v45
    %69 = vmatprep.subr.mxu0 0.0
    %70 = vmatpush1.msra.mxu0 %v46
    %71 = vmatprep.subr.mxu0 0.0
    %72 = vmatpush1.msra.mxu0 %v47
    %73 = vmatprep.subr.mxu0 0.0
    %74 = vmatpush1.msra.mxu0 %v48
    %75 = vmatprep.subr.mxu0 0.0
    %76 = vmatpush1.msra.mxu0 %v49
    %77 = vmatprep.subr.mxu0 0.0
    %78 = vmatpush1.msra.mxu0 %v50
    %79 = vmatprep.subr.mxu0 0.0
    %80 = vmatpush1.msra.mxu0 %v51
    %81 = vmatprep.subr.mxu0 0.0
    %82 = vmatpush1.msra.mxu0 %v52
    %83 = vmatprep.subr.mxu0 0.0
    %84 = vmatpush1.msra.mxu0 %v53
    %85 = vmatprep.subr.mxu0 0.0
    %86 = vmatpush1.msra.mxu0 %v54
    %87 = vmatprep.subr.mxu0 0.0
    %88 = vmatpush1.msra.mxu0 0.0
    %89 = vmatprep.subr.mxu0 0.0
    %90 = vmatpush1.msra.mxu0 0.0
    %91 = vmatprep.subr.mxu0 0.0
    %92 = vmatpush1.msra.mxu0 0.0
    %93 = vmatprep.subr.mxu0 0.0
    %94 = vmatpush1.msra.mxu0 0.0
    %95 = vmatprep.subr.mxu0 0.0
    %96 = vmatpush1.msra.mxu0 0.0
    %97 = vmatprep.subr.mxu0 0.0
    %98 = vmatpush1.msra.mxu0 0.0
    %99 = vmatprep.subr.mxu0 0.0
    %100 = vmatpush1.msra.mxu0 0.0
    %101 = vmatprep.subr.mxu0 0.0
    %102 = vmatpush1.msra.mxu0 0.0
    %103 = vmatprep.subr.mxu0 0.0
    %104 = vmatpush1.msra.mxu0 0.0
    %105 = vmatprep.subr.mxu0 0.0
    %106 = vmatpush1.msra.mxu0 0.0
    %107 = vmatprep.subr.mxu0 0.0
    %108 = vmatpush1.msra.mxu0 0.0
    %109 = vmatprep.subr.mxu0 0.0
    %110 = vmatpush1.msra.mxu0 0.0
    %111 = vmatprep.subr.mxu0 0.0
    %112 = vmatpush1.msra.mxu0 0.0
    %113 = vmatprep.subr.mxu0 0.0
    %114 = vmatpush1.msra.mxu0 0.0
    %115 = vmatprep.subr.mxu0 0.0
    %116 = vmatpush1.msra.mxu0 0.0
    %117 = vmatprep.subr.mxu0 0.0
    %118 = vmatpush1.msra.mxu0 0.0
    %119 = vmatprep.mubr.f32.mxu0 0.0
    %120 = vmatmul.mubr.f32.gmra.mrb[0].mxu0 %v38
    %v121 = vpop.f32.mrb[0].mxu0
    %v122 = vadd.f32 0.0, %v121
    %v123 = vpop.f32.mrb[0].mxu0
    %124 = vdwg.mxu0
    %v125 = vlaneseq
    %v126 = vand.u32 %v125, 127
    %vm127 = vcmp.lt.s32.totalorder %v126, 16
    %v128 = vsel %vm127, %v122, -inf
    %129 = vmax.xlane.f32.xlu0 %v128
    %v130 = vpop.xlane.xlu0 %129
    %v131 = vsub.f32 %v128, %v130
    %v132 = vmul.f32 %v131, 1.442695
    %v133 = vpow.pop %v132
    %134 = vadd.xlane.f32.xlu0 %v133
    %v135 = vpop.xlane.xlu0 %134
    %v136 = vlog2.pop %v135
    %v137 = vmul.f32 %v136, 0.6931472
    %v138 = vsub.f32 %v131, %v137
    %139 = vst [vmem:[#allocation7] sm:$0xff] %v138
    // Predicated region
    $region18: #{tpu_custom_call.1} parent=1 // pred_check
      _
    $region19: #{tpu_custom_call.1} parent=1 // pred_check_branch
      %141 = sbr.rel (0) target = $region21
    $region20: #{tpu_custom_call.1} parent=1 // pred_region
      %s143 = ssub.s32 128, 128
      %144 = vsyncadd [#allocation4], %s143
      %s146 = sshll.u32 [#allocation7], 4
      %s147 = int_to_ptr.vmem [resolvable:$true] %s146
      %149 = dma.vmem_to_hbm [thread:$0]  %s147, 128, %s2, [#allocation4]
    $region21: #{tpu_custom_call.1} parent=1 // pred_fallthru
      _
    // Predicated region
    $region22: #{tpu_custom_call.1} parent=1 // pred_check
      _
    $region23: #{tpu_custom_call.1} parent=1 // pred_check_branch
      %151 = sbr.rel (0) target = $region25
    $region24: #{tpu_custom_call.1} parent=1 // pred_region
      %152 = dma.done [#allocation4], 128
    $region25: #{tpu_custom_call.1} parent=1 // pred_fallthru
      _
    %153 = vsyncpa [#allocation3], 1
    %154 = vsyncpa [#allocation6], 1
    %155 = vsyncpa [#allocation4], 1

</llo_original>
